<compile_context>
chip_gen: v7x
topology: tpu7x:2x2x1
jax: 0.10.0
libtpu: 0.0.40
codegen_flags: <defaults>
</compile_context>

<pallas_src>
import functools
import math

import jax
import jax.numpy as jnp
from jax.experimental import pallas as pl
from jax.experimental.pallas import tpu as pltpu

EPS = 1e-5
# 48 MiB is below physical VMEM on every generation (v7x: 64 MiB, v5e/v6e: 128
# MiB) while being well above what these tiles need; raise toward ~100 MiB on
# v5e/v6e once row tiles grow.
VMEM_LIMIT_BYTES = 48 * 1024 * 1024


def _compiler_params(n_axes):
    return pltpu.CompilerParams(
        dimension_semantics=("parallel",) * n_axes,
        vmem_limit_bytes=VMEM_LIMIT_BYTES)


# ----------------------------------------------------------------- kernels ----
def _pass1_kernel(*refs, stride, has_proj):
    """conv1 (3x3, stride) + optional 1x1 shortcut conv, raw outputs + partial
    per-channel (sum, sumsq) rows for their BatchNorms.  One grid step = one
    (image, row-tile)."""
    if has_proj:
        (x_ref, w1_ref, ws_ref, out1_ref, st1_ref, sc_ref, sts_ref) = refs
    else:
        (x_ref, w1_ref, out1_ref, st1_ref) = refs
        ws_ref = sc_ref = sts_ref = None

    TH, L = out1_ref.shape
    t = pl.program_id(1)
    r0 = stride * TH * t                      # first padded-input row of this tile

    acc = jnp.zeros((TH, L), jnp.float32)
    for kh in range(3):                       # 3 banded matmuls, K = W*C1, N = Wo*C2p
        if stride == 1:
            rows = x_ref[pl.ds(r0 + kh, TH), :]
        else:
            rows = x_ref[pl.ds(r0 + kh, TH, stride), :]
        acc = acc + jnp.dot(rows, w1_ref[kh], preferred_element_type=jnp.float32)

    out1_ref[...] = acc.astype(out1_ref.dtype)
    st1_ref[...] = jnp.concatenate(
        [jnp.sum(acc, axis=0, keepdims=True),
         jnp.sum(acc * acc, axis=0, keepdims=True)], axis=0)

    if has_proj:
        if stride == 1:
            xs = x_ref[pl.ds(r0 + 1, TH), :]
        else:
            xs = x_ref[pl.ds(r0 + 1, TH, stride), :]
        sc = jnp.dot(xs, ws_ref[...], preferred_element_type=jnp.float32)
        sc_ref[...] = sc.astype(sc_ref.dtype)
        sts_ref[...] = jnp.concatenate(
            [jnp.sum(sc, axis=0, keepdims=True),
             jnp.sum(sc * sc, axis=0, keepdims=True)], axis=0)


def _pass2_kernel(y_ref, sc1_ref, sh1_ref, w2_ref, out2_ref, st2_ref):
    """Apply BN1 + ReLU (lane-dense scale/shift rows), conv2 (3x3, stride 1)
    on a (TH+2)-row halo window, emit raw conv2 + partial BN2 stats."""
    TH, L = out2_ref.shape
    Ho = y_ref.shape[0]
    t = pl.program_id(1)
    T = pl.num_programs(1)

    r0 = pl.multiple_of(t * TH, TH)
    top = y_ref[pl.ds(jnp.maximum(r0 - 1, 0), 1), :]        # halo row above (clamped)
    mid = y_ref[pl.ds(r0, TH), :]
    bot = y_ref[pl.ds(jnp.minimum(r0 + TH, Ho - 1), 1), :]  # halo row below (clamped)
    win = jnp.concatenate([top, mid, bot], axis=0).astype(jnp.float32)

    # BN1 + ReLU in the lane-dense slab layout (full 128-lane occupancy).
    act = jnp.maximum(win * sc1_ref[...] + sh1_ref[...], 0.0)
    # conv2's zero padding lives in the *post-activation* domain: zero the halo
    # rows that fall outside the image.
    row = jax.lax.broadcasted_iota(jnp.int32, (TH + 2, 1), 0)
    pad = ((row == 0) & (t == 0)) | ((row == TH + 1) & (t == T - 1))
    act = jnp.where(pad, 0.0, act).astype(w2_ref.dtype)

    acc = jnp.zeros((TH, L), jnp.float32)
    for kh in range(3):                       # banded matmuls, K = N = Wo*C2p
        acc = acc + jnp.dot(act[kh:kh + TH, :], w2_ref[kh],
                            preferred_element_type=jnp.float32)

    out2_ref[...] = acc.astype(out2_ref.dtype)
    st2_ref[...] = jnp.concatenate(
        [jnp.sum(acc, axis=0, keepdims=True),
         jnp.sum(acc * acc, axis=0, keepdims=True)], axis=0)


def _pass3_kernel(a_ref, b_ref, s2_ref, t2_ref, ss_ref, ts_ref, o_ref):
    """Epilogue: BN2 / shortcut-BN apply + residual add + ReLU, lane-dense."""
    o = (a_ref[...].astype(jnp.float32) * s2_ref[...] + t2_ref[...]
         + b_ref[...].astype(jnp.float32) * ss_ref[...] + ts_ref[...])
    o_ref[...] = jnp.maximum(o, 0.0).astype(o_ref.dtype)


# ---------------------------------------------------- banded weight helpers ----
def _band_weights_3x3(w_hwio, w_in, w_out, stride, cin_pad, cout_pad):
    """(3,3,Cin,Cout) HWIO kernel -> (3, w_in*cin_pad, w_out*cout_pad).

    Row index = input_col * cin_pad + cin ; col index = output_col * cout_pad + cout.
    The W-direction zero padding (pad=1) and the column stride are folded into
    the band structure, so activations never need W padding or im2col.
    """
    kh_n, kw_n, cin, cout = w_hwio.shape
    w_hwio = w_hwio.astype(jnp.float32)
    cols = jnp.arange(w_out)
    mats = []
    for kh in range(kh_n):
        m = jnp.zeros((w_in, cin_pad, w_out, cout_pad), jnp.float32)
        for kw in range(kw_n):
            cin_col = stride * cols + kw - 1            # input column per output column
            valid = (cin_col >= 0) & (cin_col < w_in)
            wk = jnp.pad(w_hwio[kh, kw],
                         ((0, cin_pad - cin), (0, cout_pad - cout)))
            vals = jnp.where(valid[:, None, None], wk[None], 0.0)
            m = m.at[jnp.clip(cin_col, 0, w_in - 1), :, cols, :].add(vals)
        mats.append(m.reshape(w_in * cin_pad, w_out * cout_pad))
    return jnp.stack(mats)


def _band_weights_1x1(w_io, w_in, w_out, stride, cout_pad):
    cin, cout = w_io.shape
    wk = jnp.pad(w_io.astype(jnp.float32), ((0, 0), (0, cout_pad - cout)))
    cols = jnp.arange(w_out)
    m = jnp.zeros((w_in, cin, w_out, cout_pad), jnp.float32)
    m = m.at[stride * cols, :, cols, :].set(
        jnp.broadcast_to(wk, (w_out, cin, cout_pad)))
    return m.reshape(w_in * cin, w_out * cout_pad)


# -------------------------------------------------------------- BN helpers ----
def _pad_gamma_beta(gamma, beta, c_pad):
    gamma = gamma.reshape(-1).astype(jnp.float32)
    beta = beta.reshape(-1).astype(jnp.float32)
    extra = c_pad - gamma.shape[0]
    if extra:
        gamma = jnp.concatenate([gamma, jnp.ones((extra,), jnp.float32)])
        beta = jnp.concatenate([beta, jnp.zeros((extra,), jnp.float32)])
    return gamma, beta


def _bn_rows(stats, gamma, beta, count, wo, c_pad):
    """Combine per-tile partial (sum, sumsq) rows -> lane-tiled (1, Wo*Cp)
    scale/shift rows (PyTorch train-mode BN: biased variance, eps=1e-5)."""
    s = stats.sum(axis=0).reshape(2, wo, c_pad).sum(axis=1)      # (2, Cp)
    mean = s[0] / count
    var = jnp.maximum(s[1] / count - mean * mean, 0.0)           # clamp (review concern)
    scale = gamma * jax.lax.rsqrt(var + EPS)
    shift = beta - mean * scale
    return (jnp.tile(scale.reshape(1, c_pad), (1, wo)).astype(jnp.float32),
            jnp.tile(shift.reshape(1, c_pad), (1, wo)).astype(jnp.float32))


# ----------------------------------------------------------------- wrapper ----
def residual_block(x_nchw, params, *, stride=1, matmul_dtype=jnp.float32):
    """x_nchw: (N, C1, H, W) float32 -> (N, C2, Ho, Wo) float32."""
    N, C1, H, W = x_nchw.shape
    C2 = params["w1"].shape[-1]
    Ho = (H + 2 - 3) // stride + 1
    Wo = (W + 2 - 3) // stride + 1
    has_proj = (stride != 1) or (C1 != C2)

    # Lane-dense guarantee: pad C2 -> C2p so Wo*C2p is a multiple of 128
    # (unmasked vst on every generation, not just when Wo*C2 == 128).
    g = 128 // math.gcd(Wo, 128)
    C2p = ((C2 + g - 1) // g) * g
    L = Wo * C2p

    TH = 8 if (Ho % 8 == 0) else Ho          # per-image row tile
    T = Ho // TH

    # -------- wrapper-side layout plumbing (channel-fastest slabs) -----------
    x_nhwc = jnp.transpose(x_nchw, (0, 2, 3, 1)).astype(jnp.float32)
    x_slab = jnp.pad(x_nhwc, ((0, 0), (1, 1), (0, 0), (0, 0)))
    x_slab = x_slab.reshape(N, H + 2, W * C1).astype(matmul_dtype)

    w1b = _band_weights_3x3(params["w1"], W, Wo, stride, C1, C2p).astype(matmul_dtype)
    w2b = _band_weights_3x3(params["w2"], Wo, Wo, 1, C2p, C2p).astype(matmul_dtype)

    g1, b1 = _pad_gamma_beta(params["g1"], params["b1"], C2p)
    g2, b2 = _pad_gamma_beta(params["g2"], params["b2"], C2p)

    # -------- pass 1: conv1 (+ shortcut conv) raw + partial BN stats ---------
    in1 = [x_slab, w1b]
    in_specs1 = [pl.BlockSpec((None, H + 2, W * C1), lambda n, t: (n, 0, 0)),
                 pl.BlockSpec((3, W * C1, L), lambda n, t: (0, 0, 0))]
    out_shape1 = [jax.ShapeDtypeStruct((N * Ho, L), matmul_dtype),   # out1 raw
                  jax.ShapeDtypeStruct((N * T, 2, L), jnp.float32)]  # BN1 partials
    out_specs1 = [pl.BlockSpec((TH, L), lambda n, t: (n * T + t, 0)),
                  pl.BlockSpec((None, 2, L), lambda n, t: (n * T + t, 0, 0))]
    if has_proj:
        wsb = _band_weights_1x1(params["ws"], W, Wo, stride, C2p).astype(matmul_dtype)
        in1.append(wsb)
        in_specs1.append(pl.BlockSpec((W * C1, L), lambda n, t: (0, 0)))
        out_shape1 += [jax.ShapeDtypeStruct((N * Ho, L), jnp.float32),   # shortcut raw
                       jax.ShapeDtypeStruct((N * T, 2, L), jnp.float32)]
        out_specs1 += [pl.BlockSpec((TH, L), lambda n, t: (n * T + t, 0)),
                       pl.BlockSpec((None, 2, L), lambda n, t: (n * T + t, 0, 0))]

    res1 = pl.pallas_call(
        functools.partial(_pass1_kernel, stride=stride, has_proj=has_proj),
        grid=(N, T),
        in_specs=in_specs1,
        out_specs=tuple(out_specs1),
        out_shape=tuple(out_shape1),
        compiler_params=_compiler_params(2),
    )(*in1)
    if has_proj:
        out1_raw, stats1, sc_raw, stats_s = res1
    else:
        out1_raw, stats1 = res1

    count = N * Ho * Wo
    scale1_row, shift1_row = _bn_rows(stats1, g1, b1, count, Wo, C2p)

    # -------- pass 2: BN1+ReLU, conv2 raw + partial BN2 stats ----------------
    in2 = [out1_raw, scale1_row, shift1_row, w2b]
    in_specs2 = [pl.BlockSpec((Ho, L), lambda n, t: (n, 0)),
                 pl.BlockSpec((1, L), lambda n, t: (0, 0)),
                 pl.BlockSpec((1, L), lambda n, t: (0, 0)),
                 pl.BlockSpec((3, L, L), lambda n, t: (0, 0, 0))]
    out_shape2 = (jax.ShapeDtypeStruct((N * Ho, L), jnp.float32),
                  jax.ShapeDtypeStruct((N * T, 2, L), jnp.float32))
    out_specs2 = (pl.BlockSpec((TH, L), lambda n, t: (n * T + t, 0)),
                  pl.BlockSpec((None, 2, L), lambda n, t: (n * T + t, 0, 0)))
    out2_raw, stats2 = pl.pallas_call(
        _pass2_kernel, grid=(N, T),
        in_specs=in_specs2, out_specs=out_specs2, out_shape=out_shape2,
        compiler_params=_compiler_params(2),
    )(*in2)

    scale2_row, shift2_row = _bn_rows(stats2, g2, b2, count, Wo, C2p)

    if has_proj:
        gs, bs = _pad_gamma_beta(params["gs"], params["bs"], C2p)
        scale_s_row, shift_s_row = _bn_rows(stats_s, gs, bs, count, Wo, C2p)
        sc_slab = sc_raw
    else:
        # Identity shortcut: x itself (C1 == C2, stride == 1) in slab layout.
        xc = jnp.pad(x_nhwc, ((0, 0), (0, 0), (0, 0), (0, C2p - C2)))
        sc_slab = xc.reshape(N * Ho, L)
        scale_s_row = jnp.ones((1, L), jnp.float32)
        shift_s_row = jnp.zeros((1, L), jnp.float32)

    # -------- pass 3: BN2/BNs apply + residual add + ReLU (lane-dense) -------
    R = N * T
    in3 = [out2_raw, sc_slab, scale2_row, shift2_row, scale_s_row, shift_s_row]
    in_specs3 = ([pl.BlockSpec((TH, L), lambda r: (r, 0))] * 2
                 + [pl.BlockSpec((1, L), lambda r: (0, 0))] * 4)
    out3 = pl.pallas_call(
        _pass3_kernel, grid=(R,),
        in_specs=in_specs3,
        out_specs=pl.BlockSpec((TH, L), lambda r: (r, 0)),
        out_shape=jax.ShapeDtypeStruct((N * Ho, L), jnp.float32),
        compiler_params=_compiler_params(1),
    )(*in3)

    out = out3.reshape(N, Ho, Wo, C2p)[..., :C2]     # drop lane-pad channels
    return jnp.transpose(out, (0, 3, 1, 2))          # back to NCHW


# --------------------------------------------------------------- reference ----
def _conv_ref(x, w, stride, pad):
    return jax.lax.conv_general_dilated(
        x, w, (stride, stride), ((pad, pad), (pad, pad)),
        dimension_numbers=("NHWC", "HWIO", "NHWC"))


def _bn_ref(y, g, b):
    mean = y.mean(axis=(0, 1, 2), keepdims=True)
    var = ((y - mean) ** 2).mean(axis=(0, 1, 2), keepdims=True)
    return (y - mean) * jax.lax.rsqrt(var + EPS) * g.reshape(1, 1, 1, -1) \
        + b.reshape(1, 1, 1, -1)


def residual_block_ref(x_nchw, params, *, stride=1):
    x = jnp.transpose(x_nchw, (0, 2, 3, 1)).astype(jnp.float32)
    C1 = x.shape[-1]
    C2 = params["w1"].shape[-1]
    out = _conv_ref(x, params["w1"], stride, 1)
    out = jax.nn.relu(_bn_ref(out, params["g1"], params["b1"]))
    out = _conv_ref(out, params["w2"], 1, 1)
    out = _bn_ref(out, params["g2"], params["b2"])
    if stride != 1 or C1 != C2:
        sc = _conv_ref(x, params["ws"].reshape(1, 1, C1, C2), stride, 0)
        sc = _bn_ref(sc, params["gs"], params["bs"])
    else:
        sc = x
    return jnp.transpose(jax.nn.relu(out + sc), (0, 3, 1, 2))


# --------------------------------------------------------------------- main ----
if __name__ == "__main__":
    def make_params(key, C1, C2, has_proj):
        ks = jax.random.split(key, 9)
        p = {
            "w1": 0.1 * jax.random.normal(ks[0], (3, 3, C1, C2), jnp.float32),
            "g1": 1.0 + 0.1 * jax.random.normal(ks[1], (1, C2), jnp.float32),
            "b1": 0.1 * jax.random.normal(ks[2], (1, C2), jnp.float32),
            "w2": 0.1 * jax.random.normal(ks[3], (3, 3, C2, C2), jnp.float32),
            "g2": 1.0 + 0.1 * jax.random.normal(ks[4], (1, C2), jnp.float32),
            "b2": 0.1 * jax.random.normal(ks[5], (1, C2), jnp.float32),
        }
        if has_proj:
            p.update({
                "ws": 0.1 * jax.random.normal(ks[6], (C1, C2), jnp.float32),
                "gs": 1.0 + 0.1 * jax.random.normal(ks[7], (1, C2), jnp.float32),
                "bs": 0.1 * jax.random.normal(ks[8], (1, C2), jnp.float32),
            })
        return p

    key = jax.random.PRNGKey(0)
    k_pa, k_pb, k_xa, k_xb = jax.random.split(key, 4)

    # Case A: projection shortcut (C1 != C2), stride 1.
    N, C1, C2, H, W = 2, 4, 8, 16, 16
    params_a = make_params(k_pa, C1, C2, has_proj=True)
    x_a = jax.random.normal(k_xa, (N, C1, H, W), jnp.float32)
    out_a = jax.block_until_ready(residual_block(x_a, params_a, stride=1))
    ref_a = jax.block_until_ready(residual_block_ref(x_a, params_a, stride=1))
    assert out_a.shape == (N, C2, H, W), out_a.shape
    assert jnp.allclose(out_a, ref_a, rtol=1e-3, atol=1e-3), \
        float(jnp.max(jnp.abs(out_a - ref_a)))

    # Case B: identity shortcut (C1 == C2), stride 1.
    C = 8
    params_b = make_params(k_pb, C, C, has_proj=False)
    x_b = jax.random.normal(k_xb, (N, C, H, W), jnp.float32)
    out_b = jax.block_until_ready(residual_block(x_b, params_b, stride=1))
    ref_b = jax.block_until_ready(residual_block_ref(x_b, params_b, stride=1))
    assert out_b.shape == (N, C, H, W), out_b.shape
    assert jnp.allclose(out_b, ref_b, rtol=1e-3, atol=1e-3), \
        float(jnp.max(jnp.abs(out_b - ref_b)))

    print("KERNEL_OK")
</pallas_src>

<mosaic_0001>
module attributes {stable_mosaic.version = 11 : i64} {
  func.func @_pass1_kernel(%arg0: i32, %arg1: i32, %arg2: memref<1x18x64xf32, #tpu.memory_space<vmem>>, %arg3: memref<3x64x128xf32, #tpu.memory_space<vmem>>, %arg4: memref<64x128xf32, #tpu.memory_space<vmem>>, %arg5: memref<8x128xf32, #tpu.memory_space<vmem>>, %arg6: memref<1x2x128xf32, #tpu.memory_space<vmem>>, %arg7: memref<8x128xf32, #tpu.memory_space<vmem>>, %arg8: memref<1x2x128xf32, #tpu.memory_space<vmem>>) attributes {dimension_semantics = [#tpu.dimension_semantics<parallel>, #tpu.dimension_semantics<parallel>], iteration_bounds = array<i64: 2, 2>, scalar_prefetch = 0 : i64, scratch_operands = 0 : i64, tpu.core_type = #tpu.core_type<tc>, window_params = [{transform_indices = @transform_0, window_bounds = array<i64: 1, 18, 64>}, {pipeline_mode = #tpu.pipeline_mode<synchronous>, transform_indices = @transform_1, window_bounds = array<i64: 3, 64, 128>}, {pipeline_mode = #tpu.pipeline_mode<synchronous>, transform_indices = @transform_2, window_bounds = array<i64: 64, 128>}, {transform_indices = @transform_3, window_bounds = array<i64: 8, 128>}, {transform_indices = @transform_4, window_bounds = array<i64: 1, 2, 128>}, {transform_indices = @transform_5, window_bounds = array<i64: 8, 128>}, {transform_indices = @transform_6, window_bounds = array<i64: 1, 2, 128>}]} {
    %c8_i32 = arith.constant 8 : i32
    %0 = arith.muli %c8_i32, %arg1 : i32
    %cst = arith.constant 0.000000e+00 : f32
    %1 = vector.broadcast %cst : f32 to vector<8x128xf32>
    %c0_i32 = arith.constant 0 : i32
    %2 = arith.addi %0, %c0_i32 : i32
    %c0 = arith.constant 0 : index
    %3 = arith.index_cast %2 : i32 to index
    %c0_0 = arith.constant 0 : index
    %4 = vector.load %arg2[%c0, %3, %c0_0] : memref<1x18x64xf32, #tpu.memory_space<vmem>>, vector<1x8x64xf32>
    %5 = vector.shape_cast %4 : vector<1x8x64xf32> to vector<8x64xf32>
    %c0_1 = arith.constant 0 : index
    %c0_2 = arith.constant 0 : index
    %c0_3 = arith.constant 0 : index
    %6 = vector.load %arg3[%c0_1, %c0_2, %c0_3] : memref<3x64x128xf32, #tpu.memory_space<vmem>>, vector<1x64x128xf32>
    %7 = vector.shape_cast %6 : vector<1x64x128xf32> to vector<64x128xf32>
    %cst_4 = arith.constant dense<0.000000e+00> : vector<8x128xf32>
    %8 = tpu.matmul %5, %7, %cst_4 {dimension_numbers = #tpu.dot_dimension_numbers<[1], [0], [0], [1], [0, 0, 1, 1], [], []>} : vector<8x64xf32>, vector<64x128xf32>, vector<8x128xf32> -> vector<8x128xf32>
    %9 = arith.addf %1, %8 : vector<8x128xf32>
    %c1_i32 = arith.constant 1 : i32
    %10 = arith.addi %0, %c1_i32 : i32
    %c0_5 = arith.constant 0 : index
    %11 = arith.index_cast %10 : i32 to index
    %c0_6 = arith.constant 0 : index
    %12 = vector.load %arg2[%c0_5, %11, %c0_6] : memref<1x18x64xf32, #tpu.memory_space<vmem>>, vector<1x8x64xf32>
    %13 = vector.shape_cast %12 : vector<1x8x64xf32> to vector<8x64xf32>
    %c1 = arith.constant 1 : index
    %c0_7 = arith.constant 0 : index
    %c0_8 = arith.constant 0 : index
    %14 = vector.load %arg3[%c1, %c0_7, %c0_8] : memref<3x64x128xf32, #tpu.memory_space<vmem>>, vector<1x64x128xf32>
    %15 = vector.shape_cast %14 : vector<1x64x128xf32> to vector<64x128xf32>
    %cst_9 = arith.constant dense<0.000000e+00> : vector<8x128xf32>
    %16 = tpu.matmul %13, %15, %cst_9 {dimension_numbers = #tpu.dot_dimension_numbers<[1], [0], [0], [1], [0, 0, 1, 1], [], []>} : vector<8x64xf32>, vector<64x128xf32>, vector<8x128xf32> -> vector<8x128xf32>
    %17 = arith.addf %9, %16 : vector<8x128xf32>
    %c2_i32 = arith.constant 2 : i32
    %18 = arith.addi %0, %c2_i32 : i32
    %c0_10 = arith.constant 0 : index
    %19 = arith.index_cast %18 : i32 to index
    %c0_11 = arith.constant 0 : index
    %20 = vector.load %arg2[%c0_10, %19, %c0_11] : memref<1x18x64xf32, #tpu.memory_space<vmem>>, vector<1x8x64xf32>
    %21 = vector.shape_cast %20 : vector<1x8x64xf32> to vector<8x64xf32>
    %c2 = arith.constant 2 : index
    %c0_12 = arith.constant 0 : index
    %c0_13 = arith.constant 0 : index
    %22 = vector.load %arg3[%c2, %c0_12, %c0_13] : memref<3x64x128xf32, #tpu.memory_space<vmem>>, vector<1x64x128xf32>
    %23 = vector.shape_cast %22 : vector<1x64x128xf32> to vector<64x128xf32>
    %cst_14 = arith.constant dense<0.000000e+00> : vector<8x128xf32>
    %24 = tpu.matmul %21, %23, %cst_14 {dimension_numbers = #tpu.dot_dimension_numbers<[1], [0], [0], [1], [0, 0, 1, 1], [], []>} : vector<8x64xf32>, vector<64x128xf32>, vector<8x128xf32> -> vector<8x128xf32>
    %25 = arith.addf %17, %24 : vector<8x128xf32>
    %c0_15 = arith.constant 0 : index
    %c0_16 = arith.constant 0 : index
    %26 = vector.load %arg5[%c0_15, %c0_16] : memref<8x128xf32, #tpu.memory_space<vmem>>, vector<8x128xf32>
    tpu.vector_store %arg5[%c0_15, %c0_16], %25 {strides = array<i32>} : memref<8x128xf32, #tpu.memory_space<vmem>>, vector<8x128xf32>,
    %cst_17 = arith.constant dense<0.000000e+00> : vector<128xf32>
    %27 = vector.multi_reduction <add>, %25, %cst_17 [0] : vector<8x128xf32> to vector<128xf32>
    %28 = vector.shape_cast %27 : vector<128xf32> to vector<1x128xf32>
    %29 = arith.mulf %25, %25 : vector<8x128xf32>
    %cst_18 = arith.constant dense<0.000000e+00> : vector<128xf32>
    %30 = vector.multi_reduction <add>, %29, %cst_18 [0] : vector<8x128xf32> to vector<128xf32>
    %31 = vector.shape_cast %30 : vector<128xf32> to vector<1x128xf32>
    %32 = tpu.concatenate %28, %31 in 0 : vector<1x128xf32>, vector<1x128xf32> -> vector<2x128xf32>
    %c0_19 = arith.constant 0 : index
    %c0_20 = arith.constant 0 : index
    %c0_21 = arith.constant 0 : index
    %33 = vector.load %arg6[%c0_19, %c0_20, %c0_21] : memref<1x2x128xf32, #tpu.memory_space<vmem>>, vector<1x2x128xf32>
    %34 = vector.shape_cast %33 : vector<1x2x128xf32> to vector<2x128xf32>
    %35 = vector.shape_cast %32 : vector<2x128xf32> to vector<1x2x128xf32>
    tpu.vector_store %arg6[%c0_19, %c0_20, %c0_21], %35 {strides = array<i32>} : memref<1x2x128xf32, #tpu.memory_space<vmem>>, vector<1x2x128xf32>,
    %c1_i32_22 = arith.constant 1 : i32
    %36 = arith.addi %0, %c1_i32_22 : i32
    %c0_23 = arith.constant 0 : index
    %37 = arith.index_cast %36 : i32 to index
    %c0_24 = arith.constant 0 : index
    %38 = vector.load %arg2[%c0_23, %37, %c0_24] : memref<1x18x64xf32, #tpu.memory_space<vmem>>, vector<1x8x64xf32>
    %39 = vector.shape_cast %38 : vector<1x8x64xf32> to vector<8x64xf32>
    %c0_25 = arith.constant 0 : index
    %c0_26 = arith.constant 0 : index
    %40 = vector.load %arg4[%c0_25, %c0_26] : memref<64x128xf32, #tpu.memory_space<vmem>>, vector<64x128xf32>
    %cst_27 = arith.constant dense<0.000000e+00> : vector<8x128xf32>
    %41 = tpu.matmul %39, %40, %cst_27 {dimension_numbers = #tpu.dot_dimension_numbers<[1], [0], [0], [1], [0, 0, 1, 1], [], []>} : vector<8x64xf32>, vector<64x128xf32>, vector<8x128xf32> -> vector<8x128xf32>
    %c0_28 = arith.constant 0 : index
    %c0_29 = arith.constant 0 : index
    %42 = vector.load %arg7[%c0_28, %c0_29] : memref<8x128xf32, #tpu.memory_space<vmem>>, vector<8x128xf32>
    tpu.vector_store %arg7[%c0_28, %c0_29], %41 {strides = array<i32>} : memref<8x128xf32, #tpu.memory_space<vmem>>, vector<8x128xf32>,
    %cst_30 = arith.constant dense<0.000000e+00> : vector<128xf32>
    %43 = vector.multi_reduction <add>, %41, %cst_30 [0] : vector<8x128xf32> to vector<128xf32>
    %44 = vector.shape_cast %43 : vector<128xf32> to vector<1x128xf32>
    %45 = arith.mulf %41, %41 : vector<8x128xf32>
    %cst_31 = arith.constant dense<0.000000e+00> : vector<128xf32>
    %46 = vector.multi_reduction <add>, %45, %cst_31 [0] : vector<8x128xf32> to vector<128xf32>
    %47 = vector.shape_cast %46 : vector<128xf32> to vector<1x128xf32>
    %48 = tpu.concatenate %44, %47 in 0 : vector<1x128xf32>, vector<1x128xf32> -> vector<2x128xf32>
    %c0_32 = arith.constant 0 : index
    %c0_33 = arith.constant 0 : index
    %c0_34 = arith.constant 0 : index
    %49 = vector.load %arg8[%c0_32, %c0_33, %c0_34] : memref<1x2x128xf32, #tpu.memory_space<vmem>>, vector<1x2x128xf32>
    %50 = vector.shape_cast %49 : vector<1x2x128xf32> to vector<2x128xf32>
    %51 = vector.shape_cast %48 : vector<2x128xf32> to vector<1x2x128xf32>
    tpu.vector_store %arg8[%c0_32, %c0_33, %c0_34], %51 {strides = array<i32>} : memref<1x2x128xf32, #tpu.memory_space<vmem>>, vector<1x2x128xf32>,
    return
  }
  func.func @transform_0(%arg0: i32, %arg1: i32) -> (i32, i32, i32) {
    %c0_i32 = arith.constant 0 : i32
    %c0_i32_0 = arith.constant 0 : i32
    %c0_i32_1 = arith.constant 0 : i32
    return %arg0, %c0_i32, %c0_i32_0 : i32, i32, i32
  }
  func.func @transform_1(%arg0: i32, %arg1: i32) -> (i32, i32, i32) {
    %c0_i32 = arith.constant 0 : i32
    %c0_i32_0 = arith.constant 0 : i32
    %c0_i32_1 = arith.constant 0 : i32
    %c0_i32_2 = arith.constant 0 : i32
    return %c0_i32, %c0_i32_0, %c0_i32_1 : i32, i32, i32
  }
  func.func @transform_2(%arg0: i32, %arg1: i32) -> (i32, i32) {
    %c0_i32 = arith.constant 0 : i32
    %c0_i32_0 = arith.constant 0 : i32
    %c0_i32_1 = arith.constant 0 : i32
    return %c0_i32, %c0_i32_0 : i32, i32
  }
  func.func @transform_3(%arg0: i32, %arg1: i32) -> (i32, i32) {
    %c2_i32 = arith.constant 2 : i32
    %0 = arith.muli %arg0, %c2_i32 : i32
    %1 = arith.addi %0, %arg1 : i32
    %c0_i32 = arith.constant 0 : i32
    %c0_i32_0 = arith.constant 0 : i32
    return %1, %c0_i32 : i32, i32
  }
  func.func @transform_4(%arg0: i32, %arg1: i32) -> (i32, i32, i32) {
    %c2_i32 = arith.constant 2 : i32
    %0 = arith.muli %arg0, %c2_i32 : i32
    %1 = arith.addi %0, %arg1 : i32
    %c0_i32 = arith.constant 0 : i32
    %c0_i32_0 = arith.constant 0 : i32
    %c0_i32_1 = arith.constant 0 : i32
    return %1, %c0_i32, %c0_i32_0 : i32, i32, i32
  }
  func.func @transform_5(%arg0: i32, %arg1: i32) -> (i32, i32) {
    %c2_i32 = arith.constant 2 : i32
    %0 = arith.muli %arg0, %c2_i32 : i32
    %1 = arith.addi %0, %arg1 : i32
    %c0_i32 = arith.constant 0 : i32
    %c0_i32_0 = arith.constant 0 : i32
    return %1, %c0_i32 : i32, i32
  }
  func.func @transform_6(%arg0: i32, %arg1: i32) -> (i32, i32, i32) {
    %c2_i32 = arith.constant 2 : i32
    %0 = arith.muli %arg0, %c2_i32 : i32
    %1 = arith.addi %0, %arg1 : i32
    %c0_i32 = arith.constant 0 : i32
    %c0_i32_0 = arith.constant 0 : i32
    %c0_i32_1 = arith.constant 0 : i32
    return %1, %c0_i32, %c0_i32_0 : i32, i32, i32
  }
}

</mosaic_0001>

<llo_original>
// kernel: tpu_custom_call.1
$region0: #{tpu_custom_call.1}
  #allocation0 [shape = 'u32[]', space=smem, size = 0x4, offset = 0x4, fixed_abs, tag = 'smem constant byte address 0x4 - core index']
  #allocation1 [shape = 'u32[144,128]{1,0:T(1,128)}', space=vmem, size = 0x12000, scoped, tag = 'internal scratch']
  %s0 = inlined_call_operand.vmem [shape: f32[2,18,64], index: 0, kind: input, shape index: {}]
  %s1 = inlined_call_operand.hbm [shape: f32[3,64,128], index: 1, kind: input, shape index: {}]
  %s2 = inlined_call_operand.vmem [shape: f32[64,128], index: 2, kind: input, shape index: {}]
  %s3 = inlined_call_operand.hbm [shape: f32[32,128], index: 3, kind: output, shape index: {0}]
  %s4 = inlined_call_operand.hbm [shape: f32[4,2,128], index: 4, kind: output, shape index: {1}]
  %s5 = inlined_call_operand.hbm [shape: f32[32,128], index: 5, kind: output, shape index: {2}]
  %s6 = inlined_call_operand.hbm [shape: f32[4,2,128], index: 6, kind: output, shape index: {3}]
  %7 = xla_tuple %s3, %s4, %s5, %s6
  %s8 = sld [smem:[#allocation0]]
  $region73: #{tpu_custom_call.1} parent=0
    _
  %s10 = ssub.s32 1, %s8
  %s11 = scalar_select 0, %s10, %s8
  $region1: #{tpu_custom_call.1} parent=0
    #allocation2 [shape = 'u8[98304]{0}', space=vmem, size = 0x18000, scoped, tag = 'input window, operand 1, single buffered']
    #allocation3 [shape = 's32[2]{0}', space=sflag, size = 0x8, scoped, tag = 'scoped memory for tpu_custom_call.1']
    #allocation4 [shape = 's32[2]{0}', space=sflag, size = 0x8, scoped, tag = 'scoped memory for tpu_custom_call.1']
    #allocation5 [shape = 'u8[8192]{0}', space=vmem, size = 0x2000, scoped, tag = 'output window, operand 0']
    #allocation6 [shape = 'u8[2048]{0}', space=vmem, size = 0x800, scoped, tag = 'output window, operand 1']
    #allocation7 [shape = 's32[2]{0}', space=sflag, size = 0x8, scoped, tag = 'scoped memory for tpu_custom_call.1']
    #allocation8 [shape = 'u8[8192]{0}', space=vmem, size = 0x2000, scoped, tag = 'output window, operand 2']
    #allocation9 [shape = 'u8[2048]{0}', space=vmem, size = 0x800, scoped, tag = 'output window, operand 3']
    #allocation10 [shape = 's32[2]{0}', space=sflag, size = 0x8, scoped, tag = 'scoped memory for tpu_custom_call.1']
    %12 = vsyncpa [#allocation3], 0
    %13 = vsyncpa [#allocation4], 0
    %s14 = scalar_lea.sflag [#allocation4], 1
    %15 = vsyncpa %s14, 0
    %16 = vsyncpa [#allocation7], 0
    %s17 = scalar_lea.sflag [#allocation7], 1
    %18 = vsyncpa %s17, 0
    %19 = vsyncpa [#allocation10], 0
    %s20 = scalar_lea.sflag [#allocation10], 1
    %21 = vsyncpa %s20, 0
    loop: start=0, step=1, limit=6
    $region2: #{tpu_custom_call.1} parent=1 // loop_pre_header
      _
    $region3: #{tpu_custom_call.1} parent=1 // loop_header
      %s23 = sphi 0, %s27
      %p24 = scmp.ge.s32.totalorder %s23, 6
      %s30 = sphi 0, %s42
      %s31 = sphi 0, %s38
      %s32 = sphi 0, %s30
      %s33 = sphi 0, %s31
      %s34 = sphi 0, %s32
      %s35 = sphi 0, %s33
      %s45 = sphi 0, %s47
      %s48 = sphi 0, %s45
      %s49 = sphi 0, %s48
      %s65 = sphi 0, %s49
      %s69 = sphi 0, %s69
      %s71 = sphi 0, %s69
      %s72 = sphi 0, %s71
      %s86 = sphi 0, %s72
      %s90 = sphi 0, %s90
      %s92 = sphi 0, %s90
      %s93 = sphi 0, %s92
      %s107 = sphi 0, %s93
      %s117 = sphi 0, %s119
      %s120 = sphi 0, %s117
      %s121 = sphi 0, %s120
      %s137 = sphi 0, %s121
      %s147 = sphi 0, %s149
      %s150 = sphi 0, %s147
      %s151 = sphi 0, %s150
      %s167 = sphi 0, %s151
      %s177 = sphi 0, %s179
      %s180 = sphi 0, %s177
      %s181 = sphi 0, %s180
      %s197 = sphi 0, %s181
      %s207 = sphi 0, %s209
      %s210 = sphi 0, %s207
      %s211 = sphi 0, %s210
      %s227 = sphi 0, %s211
    $region4: #{tpu_custom_call.1} parent=1 // loop_header_branch
      %26 = sbr.rel (%p24) target = $region8
    $region5: #{tpu_custom_call.1} parent=1 // loop_body
      %s28 = ssub.s32 %s23, 1
      %s29 = ssub.s32 %s23, 2
      %s36 = sadd.s32 1, %s31
      %p37 = scmp.ge.s32.totalorder %s36, 2
      %s38 = scalar_select %p37, 0, %s36
      %s39 = sadd.s32 1, %s30
      %s40 = scalar_select %p37, %s39, %s30
      %p41 = scmp.ge.s32.totalorder %s40, 2
      %s42 = scalar_select %p41, 0, %s40
      %s43 = ssub.s32 %s30, %s42
      %p44 = scmp.eq.s32.totalorder %s43, 0
      %s46 = sadd.s32 %s45, 1
      %s47 = scalar_select %p44, %s45, %s46
      %p50 = pneg %p44
      %p51 = scmp.eq.s32.totalorder %s23, 3
      %p52 = por %p50, %p51
      %p53 = scmp.ne.s32.totalorder %s45, %s48
      %p54 = scmp.eq.s32.totalorder %s23, 0
      %p55 = por %p53, %p54
      %p56 = scmp.ne.s32.totalorder %s45, %s48
      %p57 = scmp.eq.s32.totalorder %s28, 3
      %p58 = por %p56, %p57
      %p59 = scmp.ne.s32.totalorder %s48, %s49
      %p60 = scmp.eq.s32.totalorder %s28, 0
      %p61 = por %p59, %p60
      %p62 = scmp.ne.s32.totalorder %s48, %s49
      %p63 = scmp.eq.s32.totalorder %s29, 3
      %p64 = por %p62, %p63
      %p66 = scmp.ne.s32.totalorder %s49, %s65
      %p67 = scmp.eq.s32.totalorder %s29, 0
      %p68 = por %p66, %p67
      %s70 = sadd.s32 %s69, 1
      %p73 = scmp.eq.s32.totalorder %s23, 3
      %p74 = scmp.ne.s32.totalorder %s69, %s71
      %p75 = scmp.eq.s32.totalorder %s23, 0
      %p76 = por %p74, %p75
      %p77 = scmp.ne.s32.totalorder %s69, %s71
      %p78 = scmp.eq.s32.totalorder %s28, 3
      %p79 = por %p77, %p78
      %p80 = scmp.ne.s32.totalorder %s71, %s72
      %p81 = scmp.eq.s32.totalorder %s28, 0
      %p82 = por %p80, %p81
      %p83 = scmp.ne.s32.totalorder %s71, %s72
      %p84 = scmp.eq.s32.totalorder %s29, 3
      %p85 = por %p83, %p84
      %p87 = scmp.ne.s32.totalorder %s72, %s86
      %p88 = scmp.eq.s32.totalorder %s29, 0
      %p89 = por %p87, %p88
      %s91 = sadd.s32 %s90, 1
      %p94 = scmp.eq.s32.totalorder %s23, 3
      %p95 = scmp.ne.s32.totalorder %s90, %s92
      %p96 = scmp.eq.s32.totalorder %s23, 0
      %p97 = por %p95, %p96
      %p98 = scmp.ne.s32.totalorder %s90, %s92
      %p99 = scmp.eq.s32.totalorder %s28, 3
      %p100 = por %p98, %p99
      %p101 = scmp.ne.s32.totalorder %s92, %s93
      %p102 = scmp.eq.s32.totalorder %s28, 0
      %p103 = por %p101, %p102
      %p104 = scmp.ne.s32.totalorder %s92, %s93
      %p105 = scmp.eq.s32.totalorder %s29, 3
      %p106 = por %p104, %p105
      %p108 = scmp.ne.s32.totalorder %s93, %s107
      %p109 = scmp.eq.s32.totalorder %s29, 0
      %p110 = por %p108, %p109
      %s111 = smul.u32 %s30, 2
      %s112 = sadd.s32 %s111, %s31
      %s113 = smul.u32 %s42, 2
      %s114 = sadd.s32 %s113, %s38
      %s115 = ssub.s32 %s112, %s114
      %p116 = scmp.eq.s32.totalorder %s115, 0
      %s118 = sadd.s32 %s117, 1
      %s119 = scalar_select %p116, %s117, %s118
      %p122 = pneg %p116
      %p123 = scmp.eq.s32.totalorder %s23, 3
      %p124 = por %p122, %p123
      %p125 = scmp.ne.s32.totalorder %s117, %s120
      %p126 = scmp.eq.s32.totalorder %s23, 0
      %p127 = por %p125, %p126
      %p128 = scmp.ne.s32.totalorder %s117, %s120
      %p129 = scmp.eq.s32.totalorder %s28, 3
      %p130 = por %p128, %p129
      %p131 = scmp.ne.s32.totalorder %s120, %s121
      %p132 = scmp.eq.s32.totalorder %s28, 0
      %p133 = por %p131, %p132
      %p134 = scmp.ne.s32.totalorder %s120, %s121
      %p135 = scmp.eq.s32.totalorder %s29, 3
      %p136 = por %p134, %p135
      %p138 = scmp.ne.s32.totalorder %s121, %s137
      %p139 = scmp.eq.s32.totalorder %s29, 0
      %p140 = por %p138, %p139
      %s141 = smul.u32 %s30, 2
      %s142 = sadd.s32 %s141, %s31
      %s143 = smul.u32 %s42, 2
      %s144 = sadd.s32 %s143, %s38
      %s145 = ssub.s32 %s142, %s144
      %p146 = scmp.eq.s32.totalorder %s145, 0
      %s148 = sadd.s32 %s147, 1
      %s149 = scalar_select %p146, %s147, %s148
      %p152 = pneg %p146
      %p153 = scmp.eq.s32.totalorder %s23, 3
      %p154 = por %p152, %p153
      %p155 = scmp.ne.s32.totalorder %s147, %s150
      %p156 = scmp.eq.s32.totalorder %s23, 0
      %p157 = por %p155, %p156
      %p158 = scmp.ne.s32.totalorder %s147, %s150
      %p159 = scmp.eq.s32.totalorder %s28, 3
      %p160 = por %p158, %p159
      %p161 = scmp.ne.s32.totalorder %s150, %s151
      %p162 = scmp.eq.s32.totalorder %s28, 0
      %p163 = por %p161, %p162
      %p164 = scmp.ne.s32.totalorder %s150, %s151
      %p165 = scmp.eq.s32.totalorder %s29, 3
      %p166 = por %p164, %p165
      %p168 = scmp.ne.s32.totalorder %s151, %s167
      %p169 = scmp.eq.s32.totalorder %s29, 0
      %p170 = por %p168, %p169
      %s171 = smul.u32 %s30, 2
      %s172 = sadd.s32 %s171, %s31
      %s173 = smul.u32 %s42, 2
      %s174 = sadd.s32 %s173, %s38
      %s175 = ssub.s32 %s172, %s174
      %p176 = scmp.eq.s32.totalorder %s175, 0
      %s178 = sadd.s32 %s177, 1
      %s179 = scalar_select %p176, %s177, %s178
      %p182 = pneg %p176
      %p183 = scmp.eq.s32.totalorder %s23, 3
      %p184 = por %p182, %p183
      %p185 = scmp.ne.s32.totalorder %s177, %s180
      %p186 = scmp.eq.s32.totalorder %s23, 0
      %p187 = por %p185, %p186
      %p188 = scmp.ne.s32.totalorder %s177, %s180
      %p189 = scmp.eq.s32.totalorder %s28, 3
      %p190 = por %p188, %p189
      %p191 = scmp.ne.s32.totalorder %s180, %s181
      %p192 = scmp.eq.s32.totalorder %s28, 0
      %p193 = por %p191, %p192
      %p194 = scmp.ne.s32.totalorder %s180, %s181
      %p195 = scmp.eq.s32.totalorder %s29, 3
      %p196 = por %p194, %p195
      %p198 = scmp.ne.s32.totalorder %s181, %s197
      %p199 = scmp.eq.s32.totalorder %s29, 0
      %p200 = por %p198, %p199
      %s201 = smul.u32 %s30, 2
      %s202 = sadd.s32 %s201, %s31
      %s203 = smul.u32 %s42, 2
      %s204 = sadd.s32 %s203, %s38
      %s205 = ssub.s32 %s202, %s204
      %p206 = scmp.eq.s32.totalorder %s205, 0
      %s208 = sadd.s32 %s207, 1
      %s209 = scalar_select %p206, %s207, %s208
      %p212 = pneg %p206
      %p213 = scmp.eq.s32.totalorder %s23, 3
      %p214 = por %p212, %p213
      %p215 = scmp.ne.s32.totalorder %s207, %s210
      %p216 = scmp.eq.s32.totalorder %s23, 0
      %p217 = por %p215, %p216
      %p218 = scmp.ne.s32.totalorder %s207, %s210
      %p219 = scmp.eq.s32.totalorder %s28, 3
      %p220 = por %p218, %p219
      %p221 = scmp.ne.s32.totalorder %s210, %s211
      %p222 = scmp.eq.s32.totalorder %s28, 0
      %p223 = por %p221, %p222
      %p224 = scmp.ne.s32.totalorder %s210, %s211
      %p225 = scmp.eq.s32.totalorder %s29, 3
      %p226 = por %p224, %p225
      %p228 = scmp.ne.s32.totalorder %s211, %s227
      %p229 = scmp.eq.s32.totalorder %s29, 0
      %p230 = por %p228, %p229
      %p231 = scmp.le.s32.totalorder 1, %s23
      %p232 = scmp.lt.s32.totalorder %s23, 5
      %p233 = pnand %p231, %p232
      %p234 = pneg %p233
      // Predicated region
      $region9: #{tpu_custom_call.1} parent=5 // pred_check
        _
      $region10: #{tpu_custom_call.1} parent=5 // pred_check_branch
        %236 = sbr.rel (%p233) target = $region12
      $region11: #{tpu_custom_call.1} parent=5 // pred_region
        %s237 = ssub.s32 %s23, 1
        // Predicated region
        $region13: #{tpu_custom_call.1} parent=11 // pred_check
          %p238 = pneg %p82
        $region14: #{tpu_custom_call.1} parent=11 // pred_check_branch
          %240 = sbr.rel (%p238) target = $region16
        $region15: #{tpu_custom_call.1} parent=11 // pred_region
          %s242 = ssub.s32 3072, 3072
          %243 = vsyncadd [#allocation3], %s242
          %s244 = sshll.u32 [#allocation2], 4
          %s245 = int_to_ptr.vmem [resolvable:$true] %s244
          %250 = dma.hbm_to_vmem [thread:$0]  %s1, 3072, %s245, [#allocation3], 128, 128, 8
        $region16: #{tpu_custom_call.1} parent=11 // pred_fallthru
          _
        // Predicated region
        $region17: #{tpu_custom_call.1} parent=11 // pred_check
          %p251 = pneg %p103
        $region18: #{tpu_custom_call.1} parent=11 // pred_check_branch
          %253 = sbr.rel (%p251) target = $region20
        $region19: #{tpu_custom_call.1} parent=11 // pred_region
          _
        $region20: #{tpu_custom_call.1} parent=11 // pred_fallthru
          _
      $region12: #{tpu_custom_call.1} parent=5 // pred_fallthru
        _
      %p254 = scmp.lt.s32.totalorder %s23, 4
      // Predicated region
      $region21: #{tpu_custom_call.1} parent=5 // pred_check
        %p255 = pneg %p254
      $region22: #{tpu_custom_call.1} parent=5 // pred_check_branch
        %257 = sbr.rel (%p255) target = $region24
      $region23: #{tpu_custom_call.1} parent=5 // pred_region
        // Predicated region
        $region25: #{tpu_custom_call.1} parent=23 // pred_check
          %p258 = pneg %p55
        $region26: #{tpu_custom_call.1} parent=23 // pred_check_branch
          %260 = sbr.rel (%p258) target = $region28
        $region27: #{tpu_custom_call.1} parent=23 // pred_region
          %p261 = scmp.lt.s32.totalorder %s30, 1
          %s262 = scalar_select %p261, %s30, 1
          %s263 = smul.addr %s262, 3
          %s264 = smul.addr %s263, 8
          %s265 = scalar_lea.vmem %s0, %s264
        $region28: #{tpu_custom_call.1} parent=23 // pred_fallthru
          _
      $region24: #{tpu_custom_call.1} parent=5 // pred_fallthru
        _
      %p266 = scmp.le.s32.totalorder 1, %s23
      %p267 = scmp.lt.s32.totalorder %s23, 5
      %p268 = pnand %p266, %p267
      %p269 = pneg %p268
      // Predicated region
      $region29: #{tpu_custom_call.1} parent=5 // pred_check
        _
      $region30: #{tpu_custom_call.1} parent=5 // pred_check_branch
        %271 = sbr.rel (%p268) target = $region32
      $region31: #{tpu_custom_call.1} parent=5 // pred_region
        %s272 = ssub.s32 %s23, 1
        // Predicated region
        $region33: #{tpu_custom_call.1} parent=31 // pred_check
          %p273 = pneg %p82
        $region34: #{tpu_custom_call.1} parent=31 // pred_check_branch
          %275 = sbr.rel (%p273) target = $region36
        $region35: #{tpu_custom_call.1} parent=31 // pred_region
          %276 = dma.done [#allocation3], 3072
        $region36: #{tpu_custom_call.1} parent=31 // pred_fallthru
          _
        %p277 = scmp.lt.s32.totalorder %s32, 1
        %s278 = scalar_select %p277, %s32, 1
        %s279 = smul.addr %s278, 3
        %s280 = smul.addr %s279, 8
        %s281 = scalar_lea.vmem %s0, %s280
        %p282 = pneg %p61
        %p283 = pneg %p58
        %p284 = pneg %p82
        %p285 = pneg %p79
        %p286 = pneg %p103
        %p287 = pneg %p100
        %p288 = pneg %p133
        %p289 = pneg %p130
        %s290 = sand.u32 %s120, 1
        %s291 = scalar_lea.sflag [#allocation4], %s290
        %s292 = sand.u32 %s120, 1
        %s293 = smul.addr %s292, 8
        %s294 = scalar_lea.vmem [#allocation5], %s293
        %p295 = pneg %p163
        %p296 = pneg %p160
        %s297 = sand.u32 %s28, 1
        %s298 = scalar_lea.sflag [#allocation7], %s297
        %s299 = sand.u32 %s150, 1
        %s300 = smul.addr %s299, 2
        %s301 = scalar_lea.vmem [#allocation6], %s300
        %p302 = pneg %p193
        %p303 = pneg %p190
        %s304 = sand.u32 %s28, 1
        %s305 = scalar_lea.sflag [#allocation7], %s304
        %s306 = sand.u32 %s180, 1
        %s307 = smul.addr %s306, 8
        %s308 = scalar_lea.vmem [#allocation8], %s307
        %p309 = pneg %p223
        %p310 = pneg %p220
        %s311 = sand.u32 %s210, 1
        %s312 = scalar_lea.sflag [#allocation10], %s311
        %s313 = sand.u32 %s210, 1
        %s314 = smul.addr %s313, 2
        %s315 = scalar_lea.vmem [#allocation9], %s314
        %p316 = scmp.lt.s32.totalorder %s32, 1
        %s317 = scalar_select %p316, %s32, 1
        %s318 = smul.addr %s317, 3
        %s319 = smul.addr %s318, 8
        %s320 = scalar_lea.vmem %s0, %s319
        %s321 = smul.u32 %s32, 2
        %s322 = sadd.s32 %s321, %s33
        %s323 = smul.u32 %s32, 2
        %s324 = sadd.s32 %s323, %s33
        %s325 = smul.u32 %s32, 2
        %s326 = sadd.s32 %s325, %s33
        %s327 = smul.u32 %s32, 2
        %s328 = sadd.s32 %s327, %s33
        %s329 = smul.u32 %s33, 8
        %s330 = scalar_lea.vmem %s320, %s329
        %v331 = vld [vmem:[%s330] sm:$0xff]
        %v332 = vld [vmem:[#allocation2] sm:$0xff]
        %v333 = vld [vmem:[#allocation2 + $0x8] sm:$0xff]
        %v334 = vld [vmem:[#allocation2 + $0x10] sm:$0xff]
        %v335 = vld [vmem:[#allocation2 + $0x18] sm:$0xff]
        %v336 = vld [vmem:[#allocation2 + $0x20] sm:$0xff]
        %v337 = vld [vmem:[#allocation2 + $0x28] sm:$0xff]
        %v338 = vld [vmem:[#allocation2 + $0x30] sm:$0xff]
        %v339 = vld [vmem:[#allocation2 + $0x38] sm:$0xff]
        %s340 = sadd.s32 %s329, 1
        %s341 = scalar_lea.vmem %s320, %s340
        %v342 = vld [vmem:[%s341] sm:$0xff]
        %s343 = scalar_lea.vmem [#allocation2], 64
        %v344 = vld [vmem:[%s343] sm:$0xff]
        %v345 = vld [vmem:[%s343 + $0x8] sm:$0xff]
        %v346 = vld [vmem:[%s343 + $0x10] sm:$0xff]
        %v347 = vld [vmem:[%s343 + $0x18] sm:$0xff]
        %v348 = vld [vmem:[%s343 + $0x20] sm:$0xff]
        %v349 = vld [vmem:[%s343 + $0x28] sm:$0xff]
        %v350 = vld [vmem:[%s343 + $0x30] sm:$0xff]
        %v351 = vld [vmem:[%s343 + $0x38] sm:$0xff]
        %vm352 = vcmask 523264
        %v354 = vsel %vm352, %v342, 0
        %356 = vmatprep.subr.mxu0 0.0
        %357 = vmatpush1.msra.mxu0 %v344
        %358 = vmatprep.subr.mxu0 0.0
        %359 = vmatpush1.msra.mxu0 %v345
        %360 = vmatprep.subr.mxu0 0.0
        %361 = vmatpush1.msra.mxu0 %v346
        %362 = vmatprep.subr.mxu0 0.0
        %363 = vmatpush1.msra.mxu0 %v347
        %364 = vmatprep.subr.mxu0 0.0
        %365 = vmatpush1.msra.mxu0 %v348
        %366 = vmatprep.subr.mxu0 0.0
        %367 = vmatpush1.msra.mxu0 %v349
        %368 = vmatprep.subr.mxu0 0.0
        %369 = vmatpush1.msra.mxu0 %v350
        %370 = vmatprep.subr.mxu0 0.0
        %371 = vmatpush1.msra.mxu0 %v351
        %372 = vmatprep.subr.mxu0 0.0
        %373 = vmatpush1.msra.mxu0 0.0
        %374 = vmatprep.subr.mxu0 0.0
        %375 = vmatpush1.msra.mxu0 0.0
        %376 = vmatprep.subr.mxu0 0.0
        %377 = vmatpush1.msra.mxu0 0.0
        %378 = vmatprep.subr.mxu0 0.0
        %379 = vmatpush1.msra.mxu0 0.0
        %380 = vmatprep.subr.mxu0 0.0
        %381 = vmatpush1.msra.mxu0 0.0
        %382 = vmatprep.subr.mxu0 0.0
        %383 = vmatpush1.msra.mxu0 0.0
        %384 = vmatprep.subr.mxu0 0.0
        %385 = vmatpush1.msra.mxu0 0.0
        %386 = vmatprep.subr.mxu0 0.0
        %387 = vmatpush1.msra.mxu0 0.0
        %388 = vmatprep.subr.mxu0 0.0
        %389 = vmatpush1.msra.mxu0 0.0
        %390 = vmatprep.subr.mxu0 0.0
        %391 = vmatpush1.msra.mxu0 0.0
        %392 = vmatprep.subr.mxu0 0.0
        %393 = vmatpush1.msra.mxu0 0.0
        %394 = vmatprep.subr.mxu0 0.0
        %395 = vmatpush1.msra.mxu0 0.0
        %396 = vmatprep.subr.mxu0 0.0
        %397 = vmatpush1.msra.mxu0 0.0
        %398 = vmatprep.subr.mxu0 0.0
        %399 = vmatpush1.msra.mxu0 0.0
        %400 = vmatprep.subr.mxu0 0.0
        %401 = vmatpush1.msra.mxu0 0.0
        %402 = vmatprep.subr.mxu0 0.0
        %403 = vmatpush1.msra.mxu0 0.0
        %404 = vmatprep.subr.mxu0 0.0
        %405 = vmatpush1.msra.mxu0 0.0
        %406 = vmatprep.subr.mxu0 0.0
        %407 = vmatpush1.msra.mxu0 0.0
        %408 = vmatprep.subr.mxu0 0.0
        %409 = vmatpush1.msra.mxu0 0.0
        %410 = vmatprep.subr.mxu0 0.0
        %411 = vmatpush1.msra.mxu0 0.0
        %412 = vmatprep.subr.mxu0 0.0
        %413 = vmatpush1.msra.mxu0 0.0
        %414 = vmatprep.subr.mxu0 0.0
        %415 = vmatpush1.msra.mxu0 0.0
        %416 = vmatprep.subr.mxu0 0.0
        %417 = vmatpush1.msra.mxu0 0.0
        %418 = vmatprep.subr.mxu0 0.0
        %419 = vmatpush1.msra.mxu0 0.0
        %420 = vmatprep.mubr.f32.mxu0 0.0
        %421 = vmatmul.mubr.f32.gmra.mrb[0].mxu0 %v354
        %v422 = vpop.f32.mrb[0].mxu0
        %v423 = vadd.f32 0.0, %v422
        %v424 = vpop.f32.mrb[0].mxu0
        %425 = vdwg.mxu0
        %v427 = vsel %vm352, %v331, 0
        %429 = vmatprep.subr.mxu0 0.0
        %430 = vmatpush1.msra.mxu0 %v332
        %431 = vmatprep.subr.mxu0 0.0
        %432 = vmatpush1.msra.mxu0 %v333
        %433 = vmatprep.subr.mxu0 0.0
        %434 = vmatpush1.msra.mxu0 %v334
        %435 = vmatprep.subr.mxu0 0.0
        %436 = vmatpush1.msra.mxu0 %v335
        %437 = vmatprep.subr.mxu0 0.0
        %438 = vmatpush1.msra.mxu0 %v336
        %439 = vmatprep.subr.mxu0 0.0
        %440 = vmatpush1.msra.mxu0 %v337
        %441 = vmatprep.subr.mxu0 0.0
        %442 = vmatpush1.msra.mxu0 %v338
        %443 = vmatprep.subr.mxu0 0.0
        %444 = vmatpush1.msra.mxu0 %v339
        %445 = vmatprep.subr.mxu0 0.0
        %446 = vmatpush1.msra.mxu0 0.0
        %447 = vmatprep.subr.mxu0 0.0
        %448 = vmatpush1.msra.mxu0 0.0
        %449 = vmatprep.subr.mxu0 0.0
        %450 = vmatpush1.msra.mxu0 0.0
        %451 = vmatprep.subr.mxu0 0.0
        %452 = vmatpush1.msra.mxu0 0.0
        %453 = vmatprep.subr.mxu0 0.0
        %454 = vmatpush1.msra.mxu0 0.0
        %455 = vmatprep.subr.mxu0 0.0
        %456 = vmatpush1.msra.mxu0 0.0
        %457 = vmatprep.subr.mxu0 0.0
        %458 = vmatpush1.msra.mxu0 0.0
        %459 = vmatprep.subr.mxu0 0.0
        %460 = vmatpush1.msra.mxu0 0.0
        %461 = vmatprep.subr.mxu0 0.0
        %462 = vmatpush1.msra.mxu0 0.0
        %463 = vmatprep.subr.mxu0 0.0
        %464 = vmatpush1.msra.mxu0 0.0
        %465 = vmatprep.subr.mxu0 0.0
        %466 = vmatpush1.msra.mxu0 0.0
        %467 = vmatprep.subr.mxu0 0.0
        %468 = vmatpush1.msra.mxu0 0.0
        %469 = vmatprep.subr.mxu0 0.0
        %470 = vmatpush1.msra.mxu0 0.0
        %471 = vmatprep.subr.mxu0 0.0
        %472 = vmatpush1.msra.mxu0 0.0
        %473 = vmatprep.subr.mxu0 0.0
        %474 = vmatpush1.msra.mxu0 0.0
        %475 = vmatprep.subr.mxu0 0.0
        %476 = vmatpush1.msra.mxu0 0.0
        %477 = vmatprep.subr.mxu0 0.0
        %478 = vmatpush1.msra.mxu0 0.0
        %479 = vmatprep.subr.mxu0 0.0
        %480 = vmatpush1.msra.mxu0 0.0
        %481 = vmatprep.subr.mxu0 0.0
        %482 = vmatpush1.msra.mxu0 0.0
        %483 = vmatprep.subr.mxu0 0.0
        %484 = vmatpush1.msra.mxu0 0.0
        %485 = vmatprep.subr.mxu0 0.0
        %486 = vmatpush1.msra.mxu0 0.0
        %487 = vmatprep.subr.mxu0 0.0
        %488 = vmatpush1.msra.mxu0 0.0
        %489 = vmatprep.subr.mxu0 0.0
        %490 = vmatpush1.msra.mxu0 0.0
        %491 = vmatprep.subr.mxu0 0.0
        %492 = vmatpush1.msra.mxu0 0.0
        %493 = vmatprep.mubr.f32.mxu0 0.0
        %494 = vmatmul.mubr.f32.gmra.mrb[0].mxu0 %v427
        %v495 = vpop.f32.mrb[0].mxu0
        %v496 = vadd.f32 %v423, %v495
        %v497 = vpop.f32.mrb[0].mxu0
        %498 = vdwg.mxu0
        %s499 = sadd.s32 %s329, 2
        %s500 = scalar_lea.vmem %s320, %s499
        %v501 = vld [vmem:[%s500] sm:$0xff]
        %s502 = scalar_lea.vmem [#allocation2], 128
        %v503 = vld [vmem:[%s502] sm:$0xff]
        %v504 = vld [vmem:[%s502 + $0x8] sm:$0xff]
        %v505 = vld [vmem:[%s502 + $0x10] sm:$0xff]
        %v506 = vld [vmem:[%s502 + $0x18] sm:$0xff]
        %v507 = vld [vmem:[%s502 + $0x20] sm:$0xff]
        %v508 = vld [vmem:[%s502 + $0x28] sm:$0xff]
        %v509 = vld [vmem:[%s502 + $0x30] sm:$0xff]
        %v510 = vld [vmem:[%s502 + $0x38] sm:$0xff]
        %v512 = vsel %vm352, %v501, 0
        %514 = vmatprep.subr.mxu0 0.0
        %515 = vmatpush1.msra.mxu0 %v503
        %516 = vmatprep.subr.mxu0 0.0
        %517 = vmatpush1.msra.mxu0 %v504
        %518 = vmatprep.subr.mxu0 0.0
        %519 = vmatpush1.msra.mxu0 %v505
        %520 = vmatprep.subr.mxu0 0.0
        %521 = vmatpush1.msra.mxu0 %v506
        %522 = vmatprep.subr.mxu0 0.0
        %523 = vmatpush1.msra.mxu0 %v507
        %524 = vmatprep.subr.mxu0 0.0
        %525 = vmatpush1.msra.mxu0 %v508
        %526 = vmatprep.subr.mxu0 0.0
        %527 = vmatpush1.msra.mxu0 %v509
        %528 = vmatprep.subr.mxu0 0.0
        %529 = vmatpush1.msra.mxu0 %v510
        %530 = vmatprep.subr.mxu0 0.0
        %531 = vmatpush1.msra.mxu0 0.0
        %532 = vmatprep.subr.mxu0 0.0
        %533 = vmatpush1.msra.mxu0 0.0
        %534 = vmatprep.subr.mxu0 0.0
        %535 = vmatpush1.msra.mxu0 0.0
        %536 = vmatprep.subr.mxu0 0.0
        %537 = vmatpush1.msra.mxu0 0.0
        %538 = vmatprep.subr.mxu0 0.0
        %539 = vmatpush1.msra.mxu0 0.0
        %540 = vmatprep.subr.mxu0 0.0
        %541 = vmatpush1.msra.mxu0 0.0
        %542 = vmatprep.subr.mxu0 0.0
        %543 = vmatpush1.msra.mxu0 0.0
        %544 = vmatprep.subr.mxu0 0.0
        %545 = vmatpush1.msra.mxu0 0.0
        %546 = vmatprep.subr.mxu0 0.0
        %547 = vmatpush1.msra.mxu0 0.0
        %548 = vmatprep.subr.mxu0 0.0
        %549 = vmatpush1.msra.mxu0 0.0
        %550 = vmatprep.subr.mxu0 0.0
        %551 = vmatpush1.msra.mxu0 0.0
        %552 = vmatprep.subr.mxu0 0.0
        %553 = vmatpush1.msra.mxu0 0.0
        %554 = vmatprep.subr.mxu0 0.0
        %555 = vmatpush1.msra.mxu0 0.0
        %556 = vmatprep.subr.mxu0 0.0
        %557 = vmatpush1.msra.mxu0 0.0
        %558 = vmatprep.subr.mxu0 0.0
        %559 = vmatpush1.msra.mxu0 0.0
        %560 = vmatprep.subr.mxu0 0.0
        %561 = vmatpush1.msra.mxu0 0.0
        %562 = vmatprep.subr.mxu0 0.0
        %563 = vmatpush1.msra.mxu0 0.0
        %564 = vmatprep.subr.mxu0 0.0
        %565 = vmatpush1.msra.mxu0 0.0
        %566 = vmatprep.subr.mxu0 0.0
        %567 = vmatpush1.msra.mxu0 0.0
        %568 = vmatprep.subr.mxu0 0.0
        %569 = vmatpush1.msra.mxu0 0.0
        %570 = vmatprep.subr.mxu0 0.0
        %571 = vmatpush1.msra.mxu0 0.0
        %572 = vmatprep.subr.mxu0 0.0
        %573 = vmatpush1.msra.mxu0 0.0
        %574 = vmatprep.subr.mxu0 0.0
        %575 = vmatpush1.msra.mxu0 0.0
        %576 = vmatprep.subr.mxu0 0.0
        %577 = vmatpush1.msra.mxu0 0.0
        %578 = vmatprep.mubr.f32.mxu0 0.0
        %579 = vmatmul.mubr.f32.gmra.mrb[0].mxu0 %v512
        %v580 = vpop.f32.mrb[0].mxu0
        %v581 = vadd.f32 0.0, %v580
        %v582 = vpop.f32.mrb[0].mxu0
        %583 = vdwg.mxu0
        %v584 = vadd.f32 %v496, %v581
        %585 = vst [vmem:[%s294] sm:$0xff] %v584
        %v586 = vrot.slane %v584, 4
        %v587 = vadd.f32 %v584, %v586
        %v588 = vrot.slane %v587, 2
        %v589 = vadd.f32 %v587, %v588
        %v590 = vrot.slane %v589, 1
        %v591 = vadd.f32 %v589, %v590
        %v592 = vmul.f32 %v584, %v584
        %v593 = vrot.slane %v592, 4
        %v594 = vadd.f32 %v592, %v593
        %v595 = vrot.slane %v594, 2
        %v596 = vadd.f32 %v594, %v595
        %v597 = vrot.slane %v596, 1
        %v598 = vadd.f32 %v596, %v597
        %vm599 = vcmask 1040384
        %v600 = vsel %vm599, %v591, %v598
        %601 = vst [vmem:[%s301] sm:$0x3] %v600
        %v602 = vld [vmem:[%s341] sm:$0xff]
        %v603 = vld [vmem:[%s2] sm:$0xff]
        %v604 = vld [vmem:[%s2 + $0x8] sm:$0xff]
        %v605 = vld [vmem:[%s2 + $0x10] sm:$0xff]
        %v606 = vld [vmem:[%s2 + $0x18] sm:$0xff]
        %v607 = vld [vmem:[%s2 + $0x20] sm:$0xff]
        %v608 = vld [vmem:[%s2 + $0x28] sm:$0xff]
        %v609 = vld [vmem:[%s2 + $0x30] sm:$0xff]
        %v610 = vld [vmem:[%s2 + $0x38] sm:$0xff]
        %v612 = vsel %vm352, %v602, 0
        %614 = vmatprep.subr.mxu0 0.0
        %615 = vmatpush1.msra.mxu0 %v603
        %616 = vmatprep.subr.mxu0 0.0
        %617 = vmatpush1.msra.mxu0 %v604
        %618 = vmatprep.subr.mxu0 0.0
        %619 = vmatpush1.msra.mxu0 %v605
        %620 = vmatprep.subr.mxu0 0.0
        %621 = vmatpush1.msra.mxu0 %v606
        %622 = vmatprep.subr.mxu0 0.0
        %623 = vmatpush1.msra.mxu0 %v607
        %624 = vmatprep.subr.mxu0 0.0
        %625 = vmatpush1.msra.mxu0 %v608
        %626 = vmatprep.subr.mxu0 0.0
        %627 = vmatpush1.msra.mxu0 %v609
        %628 = vmatprep.subr.mxu0 0.0
        %629 = vmatpush1.msra.mxu0 %v610
        %630 = vmatprep.subr.mxu0 0.0
        %631 = vmatpush1.msra.mxu0 0.0
        %632 = vmatprep.subr.mxu0 0.0
        %633 = vmatpush1.msra.mxu0 0.0
        %634 = vmatprep.subr.mxu0 0.0
        %635 = vmatpush1.msra.mxu0 0.0
        %636 = vmatprep.subr.mxu0 0.0
        %637 = vmatpush1.msra.mxu0 0.0
        %638 = vmatprep.subr.mxu0 0.0
        %639 = vmatpush1.msra.mxu0 0.0
        %640 = vmatprep.subr.mxu0 0.0
        %641 = vmatpush1.msra.mxu0 0.0
        %642 = vmatprep.subr.mxu0 0.0
        %643 = vmatpush1.msra.mxu0 0.0
        %644 = vmatprep.subr.mxu0 0.0
        %645 = vmatpush1.msra.mxu0 0.0
        %646 = vmatprep.subr.mxu0 0.0
        %647 = vmatpush1.msra.mxu0 0.0
        %648 = vmatprep.subr.mxu0 0.0
        %649 = vmatpush1.msra.mxu0 0.0
        %650 = vmatprep.subr.mxu0 0.0
        %651 = vmatpush1.msra.mxu0 0.0
        %652 = vmatprep.subr.mxu0 0.0
        %653 = vmatpush1.msra.mxu0 0.0
        %654 = vmatprep.subr.mxu0 0.0
        %655 = vmatpush1.msra.mxu0 0.0
        %656 = vmatprep.subr.mxu0 0.0
        %657 = vmatpush1.msra.mxu0 0.0
        %658 = vmatprep.subr.mxu0 0.0
        %659 = vmatpush1.msra.mxu0 0.0
        %660 = vmatprep.subr.mxu0 0.0
        %661 = vmatpush1.msra.mxu0 0.0
        %662 = vmatprep.subr.mxu0 0.0
        %663 = vmatpush1.msra.mxu0 0.0
        %664 = vmatprep.subr.mxu0 0.0
        %665 = vmatpush1.msra.mxu0 0.0
        %666 = vmatprep.subr.mxu0 0.0
        %667 = vmatpush1.msra.mxu0 0.0
        %668 = vmatprep.subr.mxu0 0.0
        %669 = vmatpush1.msra.mxu0 0.0
        %670 = vmatprep.subr.mxu0 0.0
        %671 = vmatpush1.msra.mxu0 0.0
        %672 = vmatprep.subr.mxu0 0.0
        %673 = vmatpush1.msra.mxu0 0.0
        %674 = vmatprep.subr.mxu0 0.0
        %675 = vmatpush1.msra.mxu0 0.0
        %676 = vmatprep.subr.mxu0 0.0
        %677 = vmatpush1.msra.mxu0 0.0
        %678 = vmatprep.mubr.f32.mxu0 0.0
        %679 = vmatmul.mubr.f32.gmra.mrb[0].mxu0 %v612
        %v680 = vpop.f32.mrb[0].mxu0
        %v681 = vadd.f32 0.0, %v680
        %v682 = vpop.f32.mrb[0].mxu0
        %683 = vdwg.mxu0
        %684 = vst [vmem:[%s308] sm:$0xff] %v681
        %v685 = vrot.slane %v681, 4
        %v686 = vadd.f32 %v681, %v685
        %v687 = vrot.slane %v686, 2
        %v688 = vadd.f32 %v686, %v687
        %v689 = vrot.slane %v688, 1
        %v690 = vadd.f32 %v688, %v689
        %v691 = vmul.f32 %v681, %v681
        %v692 = vrot.slane %v691, 4
        %v693 = vadd.f32 %v691, %v692
        %v694 = vrot.slane %v693, 2
        %v695 = vadd.f32 %v693, %v694
        %v696 = vrot.slane %v695, 1
        %v697 = vadd.f32 %v695, %v696
        %v698 = vsel %vm599, %v690, %v697
        %699 = vst [vmem:[%s315] sm:$0x3] %v698
        %s700 = sand.u32 %s120, 1
        %s701 = scalar_lea.sflag [#allocation4], %s700
        %s702 = sand.u32 %s120, 1
        %s703 = smul.addr %s702, 8
        %s704 = scalar_lea.vmem [#allocation5], %s703
        %s705 = sand.u32 %s28, 1
        %s706 = scalar_lea.sflag [#allocation7], %s705
        %s707 = sand.u32 %s150, 1
        %s708 = smul.addr %s707, 2
        %s709 = scalar_lea.vmem [#allocation6], %s708
        %s710 = sand.u32 %s28, 1
        %s711 = scalar_lea.sflag [#allocation7], %s710
        %s712 = sand.u32 %s180, 1
        %s713 = smul.addr %s712, 8
        %s714 = scalar_lea.vmem [#allocation8], %s713
        %s715 = sand.u32 %s210, 1
        %s716 = scalar_lea.sflag [#allocation10], %s715
        %s717 = sand.u32 %s210, 1
        %s718 = smul.addr %s717, 2
        %s719 = scalar_lea.vmem [#allocation9], %s718
        // Predicated region
        $region37: #{tpu_custom_call.1} parent=31 // pred_check
          %p720 = pneg %p130
        $region38: #{tpu_custom_call.1} parent=31 // pred_check_branch
          %722 = sbr.rel (%p720) target = $region40
        $region39: #{tpu_custom_call.1} parent=31 // pred_region
          %s723 = smul.u32 %s32, 2
          %s724 = sadd.s32 %s723, %s33
          %s726 = ssub.s32 128, 128
          %727 = vsyncadd %s701, %s726
          %s728 = smul.addr %s724, 128
          %s729 = scalar_lea.hbm %s3, %s728
          %s731 = sshll.u32 %s704, 4
          %s732 = int_to_ptr.vmem [resolvable:$true] %s731
          %734 = dma.vmem_to_hbm [thread:$0]  %s732, 128, %s729, %s701
        $region40: #{tpu_custom_call.1} parent=31 // pred_fallthru
          _
        // Predicated region
        $region41: #{tpu_custom_call.1} parent=31 // pred_check
          %p735 = pneg %p160
        $region42: #{tpu_custom_call.1} parent=31 // pred_check_branch
          %737 = sbr.rel (%p735) target = $region44
        $region43: #{tpu_custom_call.1} parent=31 // pred_region
          %s738 = smul.u32 %s32, 2
          %s739 = sadd.s32 %s738, %s33
          %s741 = ssub.s32 32, 32
          %742 = vsyncadd %s706, %s741
          %s743 = smul.addr %s739, 32
          %s744 = scalar_lea.hbm %s4, %s743
          %s746 = sshll.u32 %s709, 4
          %s747 = int_to_ptr.vmem [resolvable:$true] %s746
          %749 = dma.vmem_to_hbm [thread:$0]  %s747, 32, %s744, %s706
        $region44: #{tpu_custom_call.1} parent=31 // pred_fallthru
          _
        // Predicated region
        $region45: #{tpu_custom_call.1} parent=31 // pred_check
          %p750 = pneg %p190
        $region46: #{tpu_custom_call.1} parent=31 // pred_check_branch
          %752 = sbr.rel (%p750) target = $region48
        $region47: #{tpu_custom_call.1} parent=31 // pred_region
          %s753 = smul.u32 %s32, 2
          %s754 = sadd.s32 %s753, %s33
          %s756 = ssub.s32 128, 128
          %757 = vsyncadd %s711, %s756
          %s758 = smul.addr %s754, 128
          %s759 = scalar_lea.hbm %s5, %s758
          %s761 = sshll.u32 %s714, 4
          %s762 = int_to_ptr.vmem [resolvable:$true] %s761
          %764 = dma.vmem_to_hbm [thread:$0]  %s762, 128, %s759, %s711
        $region48: #{tpu_custom_call.1} parent=31 // pred_fallthru
          _
        // Predicated region
        $region49: #{tpu_custom_call.1} parent=31 // pred_check
          %p765 = pneg %p220
        $region50: #{tpu_custom_call.1} parent=31 // pred_check_branch
          %767 = sbr.rel (%p765) target = $region52
        $region51: #{tpu_custom_call.1} parent=31 // pred_region
          %s768 = smul.u32 %s32, 2
          %s769 = sadd.s32 %s768, %s33
          %s771 = ssub.s32 32, 32
          %772 = vsyncadd %s716, %s771
          %s773 = smul.addr %s769, 32
          %s774 = scalar_lea.hbm %s6, %s773
          %s776 = sshll.u32 %s719, 4
          %s777 = int_to_ptr.vmem [resolvable:$true] %s776
          %779 = dma.vmem_to_hbm [thread:$0]  %s777, 32, %s774, %s716
        $region52: #{tpu_custom_call.1} parent=31 // pred_fallthru
          _
      $region32: #{tpu_custom_call.1} parent=5 // pred_fallthru
        _
      %p780 = scmp.le.s32.totalorder 2, %s23
      // Predicated region
      $region53: #{tpu_custom_call.1} parent=5 // pred_check
        %p781 = pneg %p780
      $region54: #{tpu_custom_call.1} parent=5 // pred_check_branch
        %783 = sbr.rel (%p781) target = $region56
      $region55: #{tpu_custom_call.1} parent=5 // pred_region
        %s784 = ssub.s32 %s23, 2
        // Predicated region
        $region57: #{tpu_custom_call.1} parent=55 // pred_check
          %p785 = pneg %p136
        $region58: #{tpu_custom_call.1} parent=55 // pred_check_branch
          %787 = sbr.rel (%p785) target = $region60
        $region59: #{tpu_custom_call.1} parent=55 // pred_region
          %s788 = sand.u32 %s121, 1
          %s789 = scalar_lea.sflag [#allocation4], %s788
          %s790 = sand.u32 %s121, 1
          %s791 = smul.addr %s790, 8
          %s792 = scalar_lea.vmem [#allocation5], %s791
          %793 = dma.done %s789, 128
        $region60: #{tpu_custom_call.1} parent=55 // pred_fallthru
          _
        // Predicated region
        $region61: #{tpu_custom_call.1} parent=55 // pred_check
          %p794 = pneg %p166
        $region62: #{tpu_custom_call.1} parent=55 // pred_check_branch
          %796 = sbr.rel (%p794) target = $region64
        $region63: #{tpu_custom_call.1} parent=55 // pred_region
          %s797 = sand.u32 %s29, 1
          %s798 = scalar_lea.sflag [#allocation7], %s797
          %s799 = sand.u32 %s151, 1
          %s800 = smul.addr %s799, 2
          %s801 = scalar_lea.vmem [#allocation6], %s800
          %802 = dma.done %s798, 32
        $region64: #{tpu_custom_call.1} parent=55 // pred_fallthru
          _
        // Predicated region
        $region65: #{tpu_custom_call.1} parent=55 // pred_check
          %p803 = pneg %p196
        $region66: #{tpu_custom_call.1} parent=55 // pred_check_branch
          %805 = sbr.rel (%p803) target = $region68
        $region67: #{tpu_custom_call.1} parent=55 // pred_region
          %s806 = sand.u32 %s29, 1
          %s807 = scalar_lea.sflag [#allocation7], %s806
          %s808 = sand.u32 %s181, 1
          %s809 = smul.addr %s808, 8
          %s810 = scalar_lea.vmem [#allocation8], %s809
          %811 = dma.done %s807, 128
        $region68: #{tpu_custom_call.1} parent=55 // pred_fallthru
          _
        // Predicated region
        $region69: #{tpu_custom_call.1} parent=55 // pred_check
          %p812 = pneg %p226
        $region70: #{tpu_custom_call.1} parent=55 // pred_check_branch
          %814 = sbr.rel (%p812) target = $region72
        $region71: #{tpu_custom_call.1} parent=55 // pred_region
          %s815 = sand.u32 %s211, 1
          %s816 = scalar_lea.sflag [#allocation10], %s815
          %s817 = sand.u32 %s211, 1
          %s818 = smul.addr %s817, 2
          %s819 = scalar_lea.vmem [#allocation9], %s818
          %820 = dma.done %s816, 32
        $region72: #{tpu_custom_call.1} parent=55 // pred_fallthru
          _
      $region56: #{tpu_custom_call.1} parent=5 // pred_fallthru
        _
    $region6: #{tpu_custom_call.1} parent=1 // loop_footer
      %s27 = sadd.s32 1, %s23
    $region7: #{tpu_custom_call.1} parent=1 // loop_footer_branch
      %22 = sbr.rel target = $region3
    $region8: #{tpu_custom_call.1} parent=1 // loop_exit
      _
    %821 = vsyncpa [#allocation3], 1
    %s822 = scalar_lea.sflag [#allocation3], 1
    %823 = vsyncpa %s822, 1
    %824 = vsyncpa [#allocation4], 1
    %s825 = scalar_lea.sflag [#allocation4], 1
    %826 = vsyncpa %s825, 1
    %827 = vsyncpa [#allocation7], 1
    %s828 = scalar_lea.sflag [#allocation7], 1
    %829 = vsyncpa %s828, 1
    %830 = vsyncpa [#allocation10], 1
    %s831 = scalar_lea.sflag [#allocation10], 1
    %832 = vsyncpa %s831, 1

</llo_original>
